<compile_context>
chip_gen: v7x
topology: tpu7x:2x2x1
jax: 0.10.0
libtpu: 0.0.40
codegen_flags: <defaults>
</compile_context>

<pallas_src>
import jax
import jax.numpy as jnp
from jax.experimental import pallas as pl
from jax.experimental.pallas import tpu as pltpu


# ---------------------------------------------------------------------------
# Kernel: in-kernel one-hot embedding, 3 MXU matmuls (bf16 in / f32 acc),
# bias-add + ReLU, final layer on the VPU.  BN affines already folded.
# ---------------------------------------------------------------------------
def _disc_mlp_kernel(x_ref, lab_ref,
                     wx_ref, emb_ref,
                     w2_ref, c2_ref,
                     w3_ref, c3_ref,
                     w4_ref, c4_ref,
                     o_ref):
    tb = x_ref.shape[0]
    nc = emb_ref.shape[0]

    # Layer 1:  x @ W_x + onehot(label) @ (embed @ W_e)   -> ReLU
    lab = lab_ref[...]                                            # (tb, 1) i32
    classes = jax.lax.broadcasted_iota(jnp.int32, (tb, nc), 1)
    onehot = (classes == lab).astype(jnp.bfloat16)                # (tb, nc)

    h = jnp.dot(x_ref[...], wx_ref[...], preferred_element_type=jnp.float32)
    h = h + jnp.dot(onehot, emb_ref[...], preferred_element_type=jnp.float32)
    h = jnp.maximum(h, 0.0)

    # Layer 2 (BN1 folded into w2/c2):  h @ W2 + c2 -> ReLU
    h = jnp.dot(h.astype(jnp.bfloat16), w2_ref[...],
                preferred_element_type=jnp.float32)
    h = jnp.maximum(h + c2_ref[...], 0.0)

    # Layer 3 (BN2 folded into w3/c3, Dropout = identity in eval)
    h = jnp.dot(h.astype(jnp.bfloat16), w3_ref[...],
                preferred_element_type=jnp.float32)
    h = jnp.maximum(h + c3_ref[...], 0.0)

    # Layer 4 (BN3 folded; Linear(32,1) bias folded into c4).  Computed on the
    # VPU (broadcast multiply + lane reduction) -- a 32x1 matmul would waste an
    # MXU pass and its result-FIFO drain.
    out = jnp.sum(h * w4_ref[...], axis=-1, keepdims=True) + c4_ref[...]
    o_ref[...] = out.astype(o_ref.dtype)


# ---------------------------------------------------------------------------
# Parameter init (PyTorch-equivalent layout; Linear weights stored as (in,out))
# ---------------------------------------------------------------------------
def init_params(key, input_size, num_classes):
    d_in = input_size + 63
    keys = jax.random.split(key, 6)

    def linear_w(k, fan_in, fan_out):
        bound = 1.0 / jnp.sqrt(jnp.float32(fan_in))
        return jax.random.uniform(k, (fan_in, fan_out), jnp.float32, -bound, bound)

    params = {
        "embed": jax.random.normal(keys[0], (num_classes, input_size), jnp.float32),
        "w1": linear_w(keys[1], d_in, 128),
        "w2": linear_w(keys[2], 128, 256),
        "w3": linear_w(keys[3], 256, 32),
        "w4": linear_w(keys[4], 32, 1),
        "b4": jax.random.uniform(keys[5], (1,), jnp.float32,
                                 -1.0 / jnp.sqrt(32.0), 1.0 / jnp.sqrt(32.0)),
    }
    for name, n in (("bn1", 128), ("bn2", 256), ("bn3", 32)):
        params[name] = {
            "gamma": jnp.ones((n,), jnp.float32),
            "beta": jnp.zeros((n,), jnp.float32),
            "mean": jnp.zeros((n,), jnp.float32),
            "var": jnp.ones((n,), jnp.float32),
        }
    return params


# ---------------------------------------------------------------------------
# Fold BN affines into the next layer's weights/bias; split w1 (concat removal).
# Call ONCE (outside the per-step forward path) and reuse the result.
# ---------------------------------------------------------------------------
def fold_params(params, eps=1e-5):
    def affine(bn):
        scale = bn["gamma"] / jnp.sqrt(bn["var"] + eps)
        shift = bn["beta"] - bn["mean"] * scale
        return scale, shift

    s1, t1 = affine(params["bn1"])
    s2, t2 = affine(params["bn2"])
    s3, t3 = affine(params["bn3"])

    w1, w2, w3, w4 = params["w1"], params["w2"], params["w3"], params["w4"]

    # Split point derived from the embedding width (concat order is [x, emb]).
    d_emb = params["embed"].shape[1]
    d_x = w1.shape[0] - d_emb
    wx = w1[:d_x, :]            # x part of the concat
    we = w1[d_x:, :]            # embedding part of the concat

    w2f = w2 * s1[:, None]
    w3f = w3 * s2[:, None]
    w4f = w4 * s3[:, None]                          # (32, 1)
    c2 = (t1 @ w2)[None, :]                         # (1, 256)
    c3 = (t2 @ w3)[None, :]                         # (1, 32)
    c4 = (t3 @ w4 + params["b4"])[None, :]          # (1, 1)

    # Per-class contribution of the embedding to the layer-1 preactivation.
    # One-time precompute -> do it in f32, store bf16 for the MXU.
    emb_tab = jnp.dot(params["embed"], we)          # (num_classes, 128) f32

    return {
        "wx": wx.astype(jnp.bfloat16),
        "emb_tab": emb_tab.astype(jnp.bfloat16),
        "w2": w2f.astype(jnp.bfloat16),
        "w3": w3f.astype(jnp.bfloat16),
        "w4": w4f.reshape(1, -1).astype(jnp.float32),   # (1, 32) row for the VPU
        "c2": c2.astype(jnp.float32),
        "c3": c3.astype(jnp.float32),
        "c4": c4.astype(jnp.float32),
    }


def _round_up(n, m):
    return ((n + m - 1) // m) * m


def _choose_tb(batch, block_b):
    """Batch tile: multiple of 8, <= block_b, >=2 tiles for large batches."""
    if batch <= 128:
        return _round_up(max(batch, 8), 8)
    half = _round_up(-(-batch // 2), 8)     # ceil(batch/2), rounded to 8
    return max(min(block_b, half), 128)


# ---------------------------------------------------------------------------
# Wrapper: batch-tiled pallas_call (takes PRE-FOLDED params)
# ---------------------------------------------------------------------------
def discriminator_forward(folded, x, label, *, block_b=1024):
    B, d_x = x.shape
    tb = _choose_tb(B, block_b)
    grid = pl.cdiv(B, tb)

    xb = x.astype(jnp.bfloat16)
    lab = label.astype(jnp.int32).reshape(B, 1)

    def const_spec(arr):
        # Full-extent block, constant index -> stays resident in VMEM.
        return pl.BlockSpec(arr.shape, lambda i: (0, 0))

    out = pl.pallas_call(
        _disc_mlp_kernel,
        out_shape=jax.ShapeDtypeStruct((B, 1), jnp.float32),
        grid=(grid,),
        in_specs=[
            pl.BlockSpec((tb, d_x), lambda i: (i, 0)),   # x tile (bf16)
            pl.BlockSpec((tb, 1), lambda i: (i, 0)),     # label tile (int32)
            const_spec(folded["wx"]),
            const_spec(folded["emb_tab"]),
            const_spec(folded["w2"]), const_spec(folded["c2"]),
            const_spec(folded["w3"]), const_spec(folded["c3"]),
            const_spec(folded["w4"]), const_spec(folded["c4"]),
        ],
        out_specs=pl.BlockSpec((tb, 1), lambda i: (i, 0)),
        compiler_params=pltpu.CompilerParams(
            dimension_semantics=("parallel",),
            vmem_limit_bytes=32 * 1024 * 1024),
    )(xb, lab, folded["wx"], folded["emb_tab"],
      folded["w2"], folded["c2"], folded["w3"], folded["c3"],
      folded["w4"], folded["c4"])

    return out


# ---------------------------------------------------------------------------
# References
# ---------------------------------------------------------------------------
def _reference_forward_f32(params, x, label, eps=1e-5):
    """Original eval-mode semantics, pure f32, pure JAX."""
    emb = jnp.take(params["embed"], label, axis=0)
    h = jnp.concatenate([x, emb], axis=1).astype(jnp.float32)
    for w, bn in ((params["w1"], params["bn1"]),
                  (params["w2"], params["bn2"]),
                  (params["w3"], params["bn3"])):
        h = jnp.maximum(h @ w, 0.0)
        scale = bn["gamma"] / jnp.sqrt(bn["var"] + eps)
        shift = bn["beta"] - bn["mean"] * scale
        h = h * scale[None, :] + shift[None, :]
    return h @ params["w4"] + params["b4"][None, :]


def _reference_forward_matched(folded, x, label):
    """Same folding / bf16 numerics as the kernel, but pure JAX (no Pallas)."""
    f = folded
    # one-hot @ emb_tab with exact 0/1 weights == row gather of the bf16 table.
    emb_bias = jnp.take(f["emb_tab"], label, axis=0).astype(jnp.float32)
    h = jnp.dot(x.astype(jnp.bfloat16), f["wx"], preferred_element_type=jnp.float32)
    h = jnp.maximum(h + emb_bias, 0.0)
    h = jnp.dot(h.astype(jnp.bfloat16), f["w2"], preferred_element_type=jnp.float32)
    h = jnp.maximum(h + f["c2"], 0.0)
    h = jnp.dot(h.astype(jnp.bfloat16), f["w3"], preferred_element_type=jnp.float32)
    h = jnp.maximum(h + f["c3"], 0.0)
    return jnp.sum(h * f["w4"], axis=-1, keepdims=True) + f["c4"]


if __name__ == "__main__":
    input_size = 16
    num_classes = 10
    batch = 8

    key = jax.random.PRNGKey(0)
    k_param, k_x, k_lbl = jax.random.split(key, 3)

    params = init_params(k_param, input_size, num_classes)
    x = jax.random.normal(k_x, (batch, 63), jnp.float32)
    label = jax.random.randint(k_lbl, (batch,), 0, num_classes, jnp.int32)

    # BN folding / casting / embed@We table done ONCE, outside the forward path.
    folded = jax.tree_util.tree_map(jax.block_until_ready, fold_params(params))

    forward = jax.jit(discriminator_forward, static_argnames=("block_b",))
    out = jax.block_until_ready(forward(folded, x, label))
    assert out.shape == (batch, 1)

    # Tight check vs a pure-JAX reference using identical bf16 folding/numerics.
    ref_matched = jax.block_until_ready(_reference_forward_matched(folded, x, label))
    assert jnp.allclose(out, ref_matched, atol=1e-2, rtol=1e-2), (
        float(jnp.max(jnp.abs(out - ref_matched))))

    # Loose check vs the original full-f32 eval-mode semantics.
    ref_f32 = jax.block_until_ready(_reference_forward_f32(params, x, label))
    assert jnp.allclose(out, ref_f32, atol=1e-1, rtol=1e-1), (
        float(jnp.max(jnp.abs(out - ref_f32))))

    print("KERNEL_OK")
</pallas_src>

<mosaic_0001>
module attributes {stable_mosaic.version = 11 : i64} {
  func.func @_disc_mlp_kernel(%arg0: i32, %arg1: memref<8x63xbf16, #tpu.memory_space<vmem>>, %arg2: memref<8x1xi32, #tpu.memory_space<vmem>>, %arg3: memref<63x128xbf16, #tpu.memory_space<vmem>>, %arg4: memref<10x128xbf16, #tpu.memory_space<vmem>>, %arg5: memref<128x256xbf16, #tpu.memory_space<vmem>>, %arg6: memref<1x256xf32, #tpu.memory_space<vmem>>, %arg7: memref<256x32xbf16, #tpu.memory_space<vmem>>, %arg8: memref<1x32xf32, #tpu.memory_space<vmem>>, %arg9: memref<1x32xf32, #tpu.memory_space<vmem>>, %arg10: memref<1x1xf32, #tpu.memory_space<vmem>>, %arg11: memref<8x1xf32, #tpu.memory_space<vmem>>) attributes {dimension_semantics = [#tpu.dimension_semantics<parallel>], iteration_bounds = array<i64: 1>, scalar_prefetch = 0 : i64, scratch_operands = 0 : i64, tpu.core_type = #tpu.core_type<tc>, window_params = [{transform_indices = @transform_0, window_bounds = array<i64: 8, 63>}, {transform_indices = @transform_1, window_bounds = array<i64: 8, 1>}, {pipeline_mode = #tpu.pipeline_mode<synchronous>, transform_indices = @transform_2, window_bounds = array<i64: 63, 128>}, {pipeline_mode = #tpu.pipeline_mode<synchronous>, transform_indices = @transform_3, window_bounds = array<i64: 10, 128>}, {pipeline_mode = #tpu.pipeline_mode<synchronous>, transform_indices = @transform_4, window_bounds = array<i64: 128, 256>}, {pipeline_mode = #tpu.pipeline_mode<synchronous>, transform_indices = @transform_5, window_bounds = array<i64: 1, 256>}, {pipeline_mode = #tpu.pipeline_mode<synchronous>, transform_indices = @transform_6, window_bounds = array<i64: 256, 32>}, {pipeline_mode = #tpu.pipeline_mode<synchronous>, transform_indices = @transform_7, window_bounds = array<i64: 1, 32>}, {pipeline_mode = #tpu.pipeline_mode<synchronous>, transform_indices = @transform_8, window_bounds = array<i64: 1, 32>}, {pipeline_mode = #tpu.pipeline_mode<synchronous>, transform_indices = @transform_9, window_bounds = array<i64: 1, 1>}, {transform_indices = @transform_10, window_bounds = array<i64: 8, 1>}]} {
    %c0 = arith.constant 0 : index
    %c0_0 = arith.constant 0 : index
    %0 = vector.load %arg2[%c0, %c0_0] : memref<8x1xi32, #tpu.memory_space<vmem>>, vector<8x1xi32>
    %1 = tpu.iota {dimensions = array<i32: 1>} : vector<8x10xi32>
    %2 = vector.broadcast %0 : vector<8x1xi32> to vector<8x10xi32>
    %3 = arith.cmpi eq, %1, %2 : vector<8x10xi32>
    %4 = arith.extui %3 : vector<8x10xi1> to vector<8x10xi32>
    %5 = arith.sitofp %4 : vector<8x10xi32> to vector<8x10xf32>
    %6 = arith.truncf %5 : vector<8x10xf32> to vector<8x10xbf16>
    %c0_1 = arith.constant 0 : index
    %c0_2 = arith.constant 0 : index
    %7 = vector.load %arg1[%c0_1, %c0_2] : memref<8x63xbf16, #tpu.memory_space<vmem>>, vector<8x63xbf16>
    %c0_3 = arith.constant 0 : index
    %c0_4 = arith.constant 0 : index
    %8 = vector.load %arg3[%c0_3, %c0_4] : memref<63x128xbf16, #tpu.memory_space<vmem>>, vector<63x128xbf16>
    %cst = arith.constant dense<0.000000e+00> : vector<8x128xf32>
    %9 = tpu.matmul %7, %8, %cst {dimension_numbers = #tpu.dot_dimension_numbers<[1], [0], [0], [1], [0, 0, 1, 1], [], []>} : vector<8x63xbf16>, vector<63x128xbf16>, vector<8x128xf32> -> vector<8x128xf32>
    %c0_5 = arith.constant 0 : index
    %c0_6 = arith.constant 0 : index
    %10 = vector.load %arg4[%c0_5, %c0_6] : memref<10x128xbf16, #tpu.memory_space<vmem>>, vector<10x128xbf16>
    %cst_7 = arith.constant dense<0.000000e+00> : vector<8x128xf32>
    %11 = tpu.matmul %6, %10, %cst_7 {dimension_numbers = #tpu.dot_dimension_numbers<[1], [0], [0], [1], [0, 0, 1, 1], [], []>} : vector<8x10xbf16>, vector<10x128xbf16>, vector<8x128xf32> -> vector<8x128xf32>
    %12 = arith.addf %9, %11 : vector<8x128xf32>
    %cst_8 = arith.constant 0.000000e+00 : f32
    %13 = vector.broadcast %cst_8 : f32 to vector<8x128xf32>
    %14 = arith.maximumf %12, %13 : vector<8x128xf32>
    %15 = arith.truncf %14 : vector<8x128xf32> to vector<8x128xbf16>
    %c0_9 = arith.constant 0 : index
    %c0_10 = arith.constant 0 : index
    %16 = vector.load %arg5[%c0_9, %c0_10] : memref<128x256xbf16, #tpu.memory_space<vmem>>, vector<128x256xbf16>
    %cst_11 = arith.constant dense<0.000000e+00> : vector<8x256xf32>
    %17 = tpu.matmul %15, %16, %cst_11 {dimension_numbers = #tpu.dot_dimension_numbers<[1], [0], [0], [1], [0, 0, 1, 1], [], []>} : vector<8x128xbf16>, vector<128x256xbf16>, vector<8x256xf32> -> vector<8x256xf32>
    %c0_12 = arith.constant 0 : index
    %c0_13 = arith.constant 0 : index
    %18 = vector.load %arg6[%c0_12, %c0_13] : memref<1x256xf32, #tpu.memory_space<vmem>>, vector<1x256xf32>
    %19 = vector.broadcast %18 : vector<1x256xf32> to vector<8x256xf32>
    %20 = arith.addf %17, %19 : vector<8x256xf32>
    %cst_14 = arith.constant 0.000000e+00 : f32
    %21 = vector.broadcast %cst_14 : f32 to vector<8x256xf32>
    %22 = arith.maximumf %20, %21 : vector<8x256xf32>
    %23 = arith.truncf %22 : vector<8x256xf32> to vector<8x256xbf16>
    %c0_15 = arith.constant 0 : index
    %c0_16 = arith.constant 0 : index
    %24 = vector.load %arg7[%c0_15, %c0_16] : memref<256x32xbf16, #tpu.memory_space<vmem>>, vector<256x32xbf16>
    %cst_17 = arith.constant dense<0.000000e+00> : vector<8x32xf32>
    %25 = tpu.matmul %23, %24, %cst_17 {dimension_numbers = #tpu.dot_dimension_numbers<[1], [0], [0], [1], [0, 0, 1, 1], [], []>} : vector<8x256xbf16>, vector<256x32xbf16>, vector<8x32xf32> -> vector<8x32xf32>
    %c0_18 = arith.constant 0 : index
    %c0_19 = arith.constant 0 : index
    %26 = vector.load %arg8[%c0_18, %c0_19] : memref<1x32xf32, #tpu.memory_space<vmem>>, vector<1x32xf32>
    %27 = vector.broadcast %26 : vector<1x32xf32> to vector<8x32xf32>
    %28 = arith.addf %25, %27 : vector<8x32xf32>
    %cst_20 = arith.constant 0.000000e+00 : f32
    %29 = vector.broadcast %cst_20 : f32 to vector<8x32xf32>
    %30 = arith.maximumf %28, %29 : vector<8x32xf32>
    %c0_21 = arith.constant 0 : index
    %c0_22 = arith.constant 0 : index
    %31 = vector.load %arg9[%c0_21, %c0_22] : memref<1x32xf32, #tpu.memory_space<vmem>>, vector<1x32xf32>
    %32 = vector.broadcast %31 : vector<1x32xf32> to vector<8x32xf32>
    %33 = arith.mulf %30, %32 : vector<8x32xf32>
    %cst_23 = arith.constant dense<0.000000e+00> : vector<8xf32>
    %34 = vector.multi_reduction <add>, %33, %cst_23 [1] : vector<8x32xf32> to vector<8xf32>
    %35 = vector.shape_cast %34 : vector<8xf32> to vector<8x1xf32>
    %c0_24 = arith.constant 0 : index
    %c0_25 = arith.constant 0 : index
    %36 = vector.load %arg10[%c0_24, %c0_25] : memref<1x1xf32, #tpu.memory_space<vmem>>, vector<1x1xf32>
    %37 = vector.broadcast %36 : vector<1x1xf32> to vector<8x1xf32>
    %38 = arith.addf %35, %37 : vector<8x1xf32>
    %c0_26 = arith.constant 0 : index
    %c0_27 = arith.constant 0 : index
    %39 = vector.load %arg11[%c0_26, %c0_27] : memref<8x1xf32, #tpu.memory_space<vmem>>, vector<8x1xf32>
    tpu.vector_store %arg11[%c0_26, %c0_27], %38 {strides = array<i32>} : memref<8x1xf32, #tpu.memory_space<vmem>>, vector<8x1xf32>,
    return
  }
  func.func @transform_0(%arg0: i32) -> (i32, i32) {
    %c0_i32 = arith.constant 0 : i32
    %c0_i32_0 = arith.constant 0 : i32
    return %arg0, %c0_i32 : i32, i32
  }
  func.func @transform_1(%arg0: i32) -> (i32, i32) {
    %c0_i32 = arith.constant 0 : i32
    %c0_i32_0 = arith.constant 0 : i32
    return %arg0, %c0_i32 : i32, i32
  }
  func.func @transform_2(%arg0: i32) -> (i32, i32) {
    %c0_i32 = arith.constant 0 : i32
    %c0_i32_0 = arith.constant 0 : i32
    %c0_i32_1 = arith.constant 0 : i32
    return %c0_i32, %c0_i32_0 : i32, i32
  }
  func.func @transform_3(%arg0: i32) -> (i32, i32) {
    %c0_i32 = arith.constant 0 : i32
    %c0_i32_0 = arith.constant 0 : i32
    %c0_i32_1 = arith.constant 0 : i32
    return %c0_i32, %c0_i32_0 : i32, i32
  }
  func.func @transform_4(%arg0: i32) -> (i32, i32) {
    %c0_i32 = arith.constant 0 : i32
    %c0_i32_0 = arith.constant 0 : i32
    %c0_i32_1 = arith.constant 0 : i32
    return %c0_i32, %c0_i32_0 : i32, i32
  }
  func.func @transform_5(%arg0: i32) -> (i32, i32) {
    %c0_i32 = arith.constant 0 : i32
    %c0_i32_0 = arith.constant 0 : i32
    %c0_i32_1 = arith.constant 0 : i32
    return %c0_i32, %c0_i32_0 : i32, i32
  }
  func.func @transform_6(%arg0: i32) -> (i32, i32) {
    %c0_i32 = arith.constant 0 : i32
    %c0_i32_0 = arith.constant 0 : i32
    %c0_i32_1 = arith.constant 0 : i32
    return %c0_i32, %c0_i32_0 : i32, i32
  }
  func.func @transform_7(%arg0: i32) -> (i32, i32) {
    %c0_i32 = arith.constant 0 : i32
    %c0_i32_0 = arith.constant 0 : i32
    %c0_i32_1 = arith.constant 0 : i32
    return %c0_i32, %c0_i32_0 : i32, i32
  }
  func.func @transform_8(%arg0: i32) -> (i32, i32) {
    %c0_i32 = arith.constant 0 : i32
    %c0_i32_0 = arith.constant 0 : i32
    %c0_i32_1 = arith.constant 0 : i32
    return %c0_i32, %c0_i32_0 : i32, i32
  }
  func.func @transform_9(%arg0: i32) -> (i32, i32) {
    %c0_i32 = arith.constant 0 : i32
    %c0_i32_0 = arith.constant 0 : i32
    %c0_i32_1 = arith.constant 0 : i32
    return %c0_i32, %c0_i32_0 : i32, i32
  }
  func.func @transform_10(%arg0: i32) -> (i32, i32) {
    %c0_i32 = arith.constant 0 : i32
    %c0_i32_0 = arith.constant 0 : i32
    return %arg0, %c0_i32 : i32, i32
  }
}

</mosaic_0001>

<llo_original>
// kernel: discriminator_forward.1
$region0: #{discriminator_forward.1}
  #allocation0 [shape = 'u32[]', space=smem, size = 0x4, offset = 0x4, fixed_abs, tag = 'smem constant byte address 0x4 - core index']
  #allocation1 [shape = 'u32[144,128]{1,0:T(1,128)}', space=vmem, size = 0x12000, scoped, tag = 'internal scratch']
  #allocation2 [shape = 'f32[1,1]{1,0:T(1,128)S(1)}', space=vmem, size = 0x200, scoped, tag = 'scoped memory for discriminator_forward.1']
  %s0 = inlined_call_operand.vmem [shape: bf16[8,63], index: 0, kind: input, shape index: {}]
  %s1 = inlined_call_operand.vmem [shape: s32[8,1], index: 1, kind: input, shape index: {}]
  %s2 = inlined_call_operand.vmem [shape: bf16[63,128], index: 2, kind: input, shape index: {}]
  %s3 = inlined_call_operand.vmem [shape: bf16[10,128], index: 3, kind: input, shape index: {}]
  %s4 = inlined_call_operand.vmem [shape: bf16[128,256], index: 4, kind: input, shape index: {}]
  %s5 = inlined_call_operand.vmem [shape: f32[1,256], index: 5, kind: input, shape index: {}]
  %s6 = inlined_call_operand.vmem [shape: bf16[256,32], index: 6, kind: input, shape index: {}]
  %s7 = inlined_call_operand.vmem [shape: f32[1,32], index: 7, kind: input, shape index: {}]
  %s8 = inlined_call_operand.hbm [shape: f32[1,32], index: 8, kind: input, shape index: {}]
  %s9 = inlined_call_operand.<no memory space> [shape: f32[1,1], index: 9, kind: input, shape index: {}]
  %s10 = inlined_call_operand.vmem [shape: f32[8,1], index: 10, kind: output, shape index: {}]
  %s11 = sld [smem:[#allocation0]]
  $region54: #{discriminator_forward.1} parent=0
    _
  %s13 = ssub.s32 1, %s11
  %s14 = scalar_select 0, %s13, %s11
  %v15 = vstv %s9
  %16 = vst [vmem:[#allocation2] sm:$0x1] %v15
  $region1: #{discriminator_forward.1} parent=0
    #allocation3 [shape = 'u8[512]{0}', space=vmem, size = 0x400, scoped, tag = 'input window, operand 8, single buffered']
    #allocation4 [shape = 's32[1]{0}', space=sflag, size = 0x4, scoped, tag = 'scoped memory for discriminator_forward.1']
    %17 = vsyncpa [#allocation4], 0
    // Predicated region
    $region2: #{discriminator_forward.1} parent=1 // pred_check
      _
    $region3: #{discriminator_forward.1} parent=1 // pred_check_branch
      %19 = sbr.rel (0) target = $region5
    $region4: #{discriminator_forward.1} parent=1 // pred_region
      _
    $region5: #{discriminator_forward.1} parent=1 // pred_fallthru
      _
    // Predicated region
    $region6: #{discriminator_forward.1} parent=1 // pred_check
      _
    $region7: #{discriminator_forward.1} parent=1 // pred_check_branch
      %21 = sbr.rel (0) target = $region9
    $region8: #{discriminator_forward.1} parent=1 // pred_region
      _
    $region9: #{discriminator_forward.1} parent=1 // pred_fallthru
      _
    // Predicated region
    $region10: #{discriminator_forward.1} parent=1 // pred_check
      _
    $region11: #{discriminator_forward.1} parent=1 // pred_check_branch
      %23 = sbr.rel (0) target = $region13
    $region12: #{discriminator_forward.1} parent=1 // pred_region
      _
    $region13: #{discriminator_forward.1} parent=1 // pred_fallthru
      _
    // Predicated region
    $region14: #{discriminator_forward.1} parent=1 // pred_check
      _
    $region15: #{discriminator_forward.1} parent=1 // pred_check_branch
      %25 = sbr.rel (0) target = $region17
    $region16: #{discriminator_forward.1} parent=1 // pred_region
      _
    $region17: #{discriminator_forward.1} parent=1 // pred_fallthru
      _
    // Predicated region
    $region18: #{discriminator_forward.1} parent=1 // pred_check
      _
    $region19: #{discriminator_forward.1} parent=1 // pred_check_branch
      %27 = sbr.rel (0) target = $region21
    $region20: #{discriminator_forward.1} parent=1 // pred_region
      _
    $region21: #{discriminator_forward.1} parent=1 // pred_fallthru
      _
    // Predicated region
    $region22: #{discriminator_forward.1} parent=1 // pred_check
      _
    $region23: #{discriminator_forward.1} parent=1 // pred_check_branch
      %29 = sbr.rel (0) target = $region25
    $region24: #{discriminator_forward.1} parent=1 // pred_region
      _
    $region25: #{discriminator_forward.1} parent=1 // pred_fallthru
      _
    // Predicated region
    $region26: #{discriminator_forward.1} parent=1 // pred_check
      _
    $region27: #{discriminator_forward.1} parent=1 // pred_check_branch
      %31 = sbr.rel (0) target = $region29
    $region28: #{discriminator_forward.1} parent=1 // pred_region
      _
    $region29: #{discriminator_forward.1} parent=1 // pred_fallthru
      _
    // Predicated region
    $region30: #{discriminator_forward.1} parent=1 // pred_check
      _
    $region31: #{discriminator_forward.1} parent=1 // pred_check_branch
      %33 = sbr.rel (0) target = $region33
    $region32: #{discriminator_forward.1} parent=1 // pred_region
      _
    $region33: #{discriminator_forward.1} parent=1 // pred_fallthru
      _
    // Predicated region
    $region34: #{discriminator_forward.1} parent=1 // pred_check
      _
    $region35: #{discriminator_forward.1} parent=1 // pred_check_branch
      %35 = sbr.rel (0) target = $region37
    $region36: #{discriminator_forward.1} parent=1 // pred_region
      %s37 = ssub.s32 16, 16
      %38 = vsyncadd [#allocation4], %s37
      %s40 = sshll.u32 [#allocation3], 4
      %s41 = int_to_ptr.vmem [resolvable:$true] %s40
      %43 = dma.hbm_to_vmem [thread:$0]  %s8, 16, %s41, [#allocation4]
    $region37: #{discriminator_forward.1} parent=1 // pred_fallthru
      _
    // Predicated region
    $region38: #{discriminator_forward.1} parent=1 // pred_check
      _
    $region39: #{discriminator_forward.1} parent=1 // pred_check_branch
      %45 = sbr.rel (0) target = $region41
    $region40: #{discriminator_forward.1} parent=1 // pred_region
      _
    $region41: #{discriminator_forward.1} parent=1 // pred_fallthru
      _
    // Predicated region
    $region42: #{discriminator_forward.1} parent=1 // pred_check
      _
    $region43: #{discriminator_forward.1} parent=1 // pred_check_branch
      %47 = sbr.rel (0) target = $region45
    $region44: #{discriminator_forward.1} parent=1 // pred_region
      %48 = dma.done [#allocation4], 16
    $region45: #{discriminator_forward.1} parent=1 // pred_fallthru
      _
    %v50 = vld [vmem:[%s1] sm:$0xff]
    %v51 = vlaneseq
    %v52 = vand.u32 %v51, 127
    %53 = vset.pattern.permute.xlu0 0
    %54 = vperm.xlu0 %53, %v50
    %v55 = vpop.permute.xlu0 %54
    %vm56 = vcmp.eq.s32.totalorder %v52, %v55
    %v57 = vsel %vm56, 1, 0
    %v58 = vcvt.s32.f32 %v57
    %v59 = vpack.c.bf16 %v58, %v58
    %v60 = vld [vmem:[%s0] sm:$0xf]
    %v61 = vld [vmem:[%s2] sm:$0xf]
    %v62 = vld [vmem:[%s2 + $0x4] sm:$0xf]
    %v63 = vld [vmem:[%s2 + $0x8] sm:$0xf]
    %v64 = vld [vmem:[%s2 + $0xc] sm:$0xf]
    %v65 = vld [vmem:[%s2 + $0x10] sm:$0xf]
    %v66 = vld [vmem:[%s2 + $0x14] sm:$0xf]
    %v67 = vld [vmem:[%s2 + $0x18] sm:$0xf]
    %v68 = vld [vmem:[%s2 + $0x1c] sm:$0xf]
    %v69 = vld [vmem:[%s3] sm:$0xf]
    %v70 = vld [vmem:[%s3 + $0x4] sm:$0x1]
    %v73 = vunpack.c.l.b16 %v69
    %v74 = vunpack.c.l.b16 %v70
    %v75 = vpack.c.b16 %v74, %v73
    %vm76 = vcmask 80896
    %v78 = vsel %vm76, %v59, 0
    %vm80 = vcmask 1044480
    %v82 = vsel %vm80, %v75, 0
    %84 = vmatprep.subr.bf16.mxu0 0
    %85 = vmatpush1.bf16.msra.mxu0 %v82
    %86 = vmatprep.subr.bf16.mxu0 0
    %87 = vmatpush1.bf16.msra.mxu0 0
    %88 = vmatprep.subr.bf16.mxu0 0
    %89 = vmatpush1.bf16.msra.mxu0 0
    %90 = vmatprep.subr.bf16.mxu0 0
    %91 = vmatpush1.bf16.msra.mxu0 0
    %92 = vmatprep.subr.bf16.mxu0 0
    %93 = vmatpush1.bf16.msra.mxu0 0
    %94 = vmatprep.subr.bf16.mxu0 0
    %95 = vmatpush1.bf16.msra.mxu0 0
    %96 = vmatprep.subr.bf16.mxu0 0
    %97 = vmatpush1.bf16.msra.mxu0 0
    %98 = vmatprep.subr.bf16.mxu0 0
    %99 = vmatpush1.bf16.msra.mxu0 0
    %100 = vmatprep.subr.bf16.mxu0 0
    %101 = vmatpush1.bf16.msra.mxu0 0
    %102 = vmatprep.subr.bf16.mxu0 0
    %103 = vmatpush1.bf16.msra.mxu0 0
    %104 = vmatprep.subr.bf16.mxu0 0
    %105 = vmatpush1.bf16.msra.mxu0 0
    %106 = vmatprep.subr.bf16.mxu0 0
    %107 = vmatpush1.bf16.msra.mxu0 0
    %108 = vmatprep.subr.bf16.mxu0 0
    %109 = vmatpush1.bf16.msra.mxu0 0
    %110 = vmatprep.subr.bf16.mxu0 0
    %111 = vmatpush1.bf16.msra.mxu0 0
    %112 = vmatprep.subr.bf16.mxu0 0
    %113 = vmatpush1.bf16.msra.mxu0 0
    %114 = vmatprep.subr.bf16.mxu0 0
    %115 = vmatpush1.bf16.msra.mxu0 0
    %116 = vmatprep.mubr.bf16.mxu0 0
    %117 = vmatmul.mubr.bf16.gmra.mrb[0].mxu0 %v78
    %v118 = vpop.f32.mrb[0].mxu0
    %v119 = vadd.f32 0.0, %v118
    %v120 = vpop.f32.mrb[0].mxu0
    %v121 = vpop.f32.mrb[0].mxu0
    %v122 = vpop.f32.mrb[0].mxu0
    %123 = vdwg.mxu0
    %v132 = vunpack.c.l.b16 %v61
    %v133 = vunpack.c.l.b16 %v62
    %v134 = vunpack.c.l.b16 %v63
    %v135 = vunpack.c.l.b16 %v64
    %v136 = vunpack.c.l.b16 %v65
    %v137 = vunpack.c.l.b16 %v66
    %v138 = vunpack.c.l.b16 %v67
    %v139 = vunpack.c.l.b16 %v68
    %v140 = vpack.c.b16 %v133, %v132
    %v141 = vpack.c.b16 %v135, %v134
    %v142 = vpack.c.b16 %v137, %v136
    %v143 = vpack.c.b16 %v139, %v138
    %vm147 = vcmask 515072
    %v149 = vsel %vm147, %v60, 0
    %vm151 = vcmask 1046528
    %vm152 = vcmask 1047552
    %v153 = vsel %vm151, 4294967295, 65535
    %v154 = vsel %vm152, %v153, 0
    %v156 = vand.u32 %v143, %v154
    %158 = vmatprep.subr.bf16.mxu0 0
    %159 = vmatpush1.bf16.msra.mxu0 %v140
    %160 = vmatprep.subr.bf16.mxu0 0
    %161 = vmatpush1.bf16.msra.mxu0 %v141
    %162 = vmatprep.subr.bf16.mxu0 0
    %163 = vmatpush1.bf16.msra.mxu0 %v142
    %164 = vmatprep.subr.bf16.mxu0 0
    %165 = vmatpush1.bf16.msra.mxu0 %v156
    %166 = vmatprep.subr.bf16.mxu0 0
    %167 = vmatpush1.bf16.msra.mxu0 0
    %168 = vmatprep.subr.bf16.mxu0 0
    %169 = vmatpush1.bf16.msra.mxu0 0
    %170 = vmatprep.subr.bf16.mxu0 0
    %171 = vmatpush1.bf16.msra.mxu0 0
    %172 = vmatprep.subr.bf16.mxu0 0
    %173 = vmatpush1.bf16.msra.mxu0 0
    %174 = vmatprep.subr.bf16.mxu0 0
    %175 = vmatpush1.bf16.msra.mxu0 0
    %176 = vmatprep.subr.bf16.mxu0 0
    %177 = vmatpush1.bf16.msra.mxu0 0
    %178 = vmatprep.subr.bf16.mxu0 0
    %179 = vmatpush1.bf16.msra.mxu0 0
    %180 = vmatprep.subr.bf16.mxu0 0
    %181 = vmatpush1.bf16.msra.mxu0 0
    %182 = vmatprep.subr.bf16.mxu0 0
    %183 = vmatpush1.bf16.msra.mxu0 0
    %184 = vmatprep.subr.bf16.mxu0 0
    %185 = vmatpush1.bf16.msra.mxu0 0
    %186 = vmatprep.subr.bf16.mxu0 0
    %187 = vmatpush1.bf16.msra.mxu0 0
    %188 = vmatprep.subr.bf16.mxu0 0
    %189 = vmatpush1.bf16.msra.mxu0 0
    %190 = vmatprep.mubr.bf16.mxu0 0
    %191 = vmatmul.mubr.bf16.gmra.mrb[0].mxu0 %v149
    %v192 = vpop.f32.mrb[0].mxu0
    %v193 = vadd.f32 %v119, %v192
    %v194 = vpop.f32.mrb[0].mxu0
    %v195 = vpop.f32.mrb[0].mxu0
    %v196 = vpop.f32.mrb[0].mxu0
    %197 = vdwg.mxu0
    %v198 = vmax.f32 %v193, 0.0
    %v199 = vpack.c.bf16 %v198, %v198
    %v200 = vld [vmem:[%s4] sm:$0xff]
    %v201 = vld [vmem:[%s4 + $0x8] sm:$0xff]
    %v202 = vld [vmem:[%s4 + $0x10] sm:$0xff]
    %v203 = vld [vmem:[%s4 + $0x18] sm:$0xff]
    %v204 = vld [vmem:[%s4 + $0x20] sm:$0xff]
    %v205 = vld [vmem:[%s4 + $0x28] sm:$0xff]
    %v206 = vld [vmem:[%s4 + $0x30] sm:$0xff]
    %v207 = vld [vmem:[%s4 + $0x38] sm:$0xff]
    %v208 = vld [vmem:[%s4 + $0x40] sm:$0xff]
    %v209 = vld [vmem:[%s4 + $0x48] sm:$0xff]
    %v210 = vld [vmem:[%s4 + $0x50] sm:$0xff]
    %v211 = vld [vmem:[%s4 + $0x58] sm:$0xff]
    %v212 = vld [vmem:[%s4 + $0x60] sm:$0xff]
    %v213 = vld [vmem:[%s4 + $0x68] sm:$0xff]
    %v214 = vld [vmem:[%s4 + $0x70] sm:$0xff]
    %v215 = vld [vmem:[%s4 + $0x78] sm:$0xff]
    %v216 = vld [vmem:[%s5] sm:$0x3]
    %v218 = vlaneseq
    %v219 = vshrl.u32 %v218, 7
    %v220 = vsub.s32 0, %v219
    %v221 = vrot.slane %v216, %v220
    %v222 = vlaneseq
    %v223 = vshrl.u32 %v222, 7
    %v224 = vsub.s32 1, %v223
    %v225 = vrot.slane %v216, %v224
    %v244 = vunpack.c.l.b16 %v200
    %v245 = vunpack.c.h.b16 %v200
    %v246 = vunpack.c.l.b16 %v201
    %v247 = vunpack.c.h.b16 %v201
    %v248 = vunpack.c.l.b16 %v202
    %v249 = vunpack.c.h.b16 %v202
    %v250 = vunpack.c.l.b16 %v203
    %v251 = vunpack.c.h.b16 %v203
    %v252 = vunpack.c.l.b16 %v204
    %v253 = vunpack.c.h.b16 %v204
    %v254 = vunpack.c.l.b16 %v205
    %v255 = vunpack.c.h.b16 %v205
    %v256 = vunpack.c.l.b16 %v206
    %v257 = vunpack.c.h.b16 %v206
    %v258 = vunpack.c.l.b16 %v207
    %v259 = vunpack.c.h.b16 %v207
    %v260 = vunpack.c.l.b16 %v208
    %v261 = vunpack.c.h.b16 %v208
    %v262 = vunpack.c.l.b16 %v209
    %v263 = vunpack.c.h.b16 %v209
    %v264 = vunpack.c.l.b16 %v210
    %v265 = vunpack.c.h.b16 %v210
    %v266 = vunpack.c.l.b16 %v211
    %v267 = vunpack.c.h.b16 %v211
    %v268 = vunpack.c.l.b16 %v212
    %v269 = vunpack.c.h.b16 %v212
    %v270 = vunpack.c.l.b16 %v213
    %v271 = vunpack.c.h.b16 %v213
    %v272 = vunpack.c.l.b16 %v214
    %v273 = vunpack.c.h.b16 %v214
    %v274 = vunpack.c.l.b16 %v215
    %v275 = vunpack.c.h.b16 %v215
    %v276 = vpack.c.b16 %v246, %v244
    %v277 = vpack.c.b16 %v247, %v245
    %v278 = vpack.c.b16 %v250, %v248
    %v279 = vpack.c.b16 %v251, %v249
    %v280 = vpack.c.b16 %v254, %v252
    %v281 = vpack.c.b16 %v255, %v253
    %v282 = vpack.c.b16 %v258, %v256
    %v283 = vpack.c.b16 %v259, %v257
    %v284 = vpack.c.b16 %v262, %v260
    %v285 = vpack.c.b16 %v263, %v261
    %v286 = vpack.c.b16 %v266, %v264
    %v287 = vpack.c.b16 %v267, %v265
    %v288 = vpack.c.b16 %v270, %v268
    %v289 = vpack.c.b16 %v271, %v269
    %v290 = vpack.c.b16 %v274, %v272
    %v291 = vpack.c.b16 %v275, %v273
    %308 = vmatprep.subr.bf16.mxu0 %v277
    %309 = vmatpush1.bf16.msra.mxu0 %v276
    %310 = vmatprep.subr.bf16.mxu0 %v279
    %311 = vmatpush1.bf16.msra.mxu0 %v278
    %312 = vmatprep.subr.bf16.mxu0 %v281
    %313 = vmatpush1.bf16.msra.mxu0 %v280
    %314 = vmatprep.subr.bf16.mxu0 %v283
    %315 = vmatpush1.bf16.msra.mxu0 %v282
    %316 = vmatprep.subr.bf16.mxu0 %v285
    %317 = vmatpush1.bf16.msra.mxu0 %v284
    %318 = vmatprep.subr.bf16.mxu0 %v287
    %319 = vmatpush1.bf16.msra.mxu0 %v286
    %320 = vmatprep.subr.bf16.mxu0 %v289
    %321 = vmatpush1.bf16.msra.mxu0 %v288
    %322 = vmatprep.subr.bf16.mxu0 %v291
    %323 = vmatpush1.bf16.msra.mxu0 %v290
    %324 = vmatprep.subr.bf16.mxu0 0
    %325 = vmatpush1.bf16.msra.mxu0 0
    %326 = vmatprep.subr.bf16.mxu0 0
    %327 = vmatpush1.bf16.msra.mxu0 0
    %328 = vmatprep.subr.bf16.mxu0 0
    %329 = vmatpush1.bf16.msra.mxu0 0
    %330 = vmatprep.subr.bf16.mxu0 0
    %331 = vmatpush1.bf16.msra.mxu0 0
    %332 = vmatprep.subr.bf16.mxu0 0
    %333 = vmatpush1.bf16.msra.mxu0 0
    %334 = vmatprep.subr.bf16.mxu0 0
    %335 = vmatpush1.bf16.msra.mxu0 0
    %336 = vmatprep.subr.bf16.mxu0 0
    %337 = vmatpush1.bf16.msra.mxu0 0
    %338 = vmatprep.subr.bf16.mxu0 0
    %339 = vmatpush1.bf16.msra.mxu0 0
    %340 = vmatprep.mubr.bf16.mxu0 0
    %341 = vmatmul.mubr.bf16.gmra.mrb[0].mxu0 %v199
    %v342 = vpop.f32.mrb[0].mxu0
    %v343 = vadd.f32 %v221, %v342
    %v344 = vpop.f32.mrb[0].mxu0
    %v345 = vadd.f32 %v225, %v344
    %v346 = vpop.f32.mrb[0].mxu0
    %v347 = vpop.f32.mrb[0].mxu0
    %348 = vdwg.mxu0
    %v349 = vmax.f32 %v343, 0.0
    %v350 = vmax.f32 %v345, 0.0
    %v351 = vpack.c.bf16 %v349, %v349
    %v352 = vpack.c.bf16 %v350, %v350
    %v353 = vld [vmem:[%s6] sm:$0xf]
    %v354 = vld [vmem:[%s6 + $0x4] sm:$0xf]
    %v355 = vld [vmem:[%s6 + $0x8] sm:$0xf]
    %v356 = vld [vmem:[%s6 + $0xc] sm:$0xf]
    %v357 = vld [vmem:[%s6 + $0x10] sm:$0xf]
    %v358 = vld [vmem:[%s6 + $0x14] sm:$0xf]
    %v359 = vld [vmem:[%s6 + $0x18] sm:$0xf]
    %v360 = vld [vmem:[%s6 + $0x1c] sm:$0xf]
    %v361 = vld [vmem:[%s6 + $0x20] sm:$0xf]
    %v362 = vld [vmem:[%s6 + $0x24] sm:$0xf]
    %v363 = vld [vmem:[%s6 + $0x28] sm:$0xf]
    %v364 = vld [vmem:[%s6 + $0x2c] sm:$0xf]
    %v365 = vld [vmem:[%s6 + $0x30] sm:$0xf]
    %v366 = vld [vmem:[%s6 + $0x34] sm:$0xf]
    %v367 = vld [vmem:[%s6 + $0x38] sm:$0xf]
    %v368 = vld [vmem:[%s6 + $0x3c] sm:$0xf]
    %v369 = vld [vmem:[%s6 + $0x40] sm:$0xf]
    %v370 = vld [vmem:[%s6 + $0x44] sm:$0xf]
    %v371 = vld [vmem:[%s6 + $0x48] sm:$0xf]
    %v372 = vld [vmem:[%s6 + $0x4c] sm:$0xf]
    %v373 = vld [vmem:[%s6 + $0x50] sm:$0xf]
    %v374 = vld [vmem:[%s6 + $0x54] sm:$0xf]
    %v375 = vld [vmem:[%s6 + $0x58] sm:$0xf]
    %v376 = vld [vmem:[%s6 + $0x5c] sm:$0xf]
    %v377 = vld [vmem:[%s6 + $0x60] sm:$0xf]
    %v378 = vld [vmem:[%s6 + $0x64] sm:$0xf]
    %v379 = vld [vmem:[%s6 + $0x68] sm:$0xf]
    %v380 = vld [vmem:[%s6 + $0x6c] sm:$0xf]
    %v381 = vld [vmem:[%s6 + $0x70] sm:$0xf]
    %v382 = vld [vmem:[%s6 + $0x74] sm:$0xf]
    %v383 = vld [vmem:[%s6 + $0x78] sm:$0xf]
    %v384 = vld [vmem:[%s6 + $0x7c] sm:$0xf]
    %v385 = vld [vmem:[%s7] sm:$0x1]
    %v387 = vlaneseq
    %v388 = vshrl.u32 %v387, 7
    %v389 = vsub.s32 0, %v388
    %v390 = vrot.slane %v385, %v389
    %v424 = vunpack.c.l.b16 %v353
    %v425 = vunpack.c.l.b16 %v354
    %v426 = vunpack.c.l.b16 %v355
    %v427 = vunpack.c.l.b16 %v356
    %v428 = vunpack.c.l.b16 %v357
    %v429 = vunpack.c.l.b16 %v358
    %v430 = vunpack.c.l.b16 %v359
    %v431 = vunpack.c.l.b16 %v360
    %v432 = vunpack.c.l.b16 %v361
    %v433 = vunpack.c.l.b16 %v362
    %v434 = vunpack.c.l.b16 %v363
    %v435 = vunpack.c.l.b16 %v364
    %v436 = vunpack.c.l.b16 %v365
    %v437 = vunpack.c.l.b16 %v366
    %v438 = vunpack.c.l.b16 %v367
    %v439 = vunpack.c.l.b16 %v368
    %v440 = vunpack.c.l.b16 %v369
    %v441 = vunpack.c.l.b16 %v370
    %v442 = vunpack.c.l.b16 %v371
    %v443 = vunpack.c.l.b16 %v372
    %v444 = vunpack.c.l.b16 %v373
    %v445 = vunpack.c.l.b16 %v374
    %v446 = vunpack.c.l.b16 %v375
    %v447 = vunpack.c.l.b16 %v376
    %v448 = vunpack.c.l.b16 %v377
    %v449 = vunpack.c.l.b16 %v378
    %v450 = vunpack.c.l.b16 %v379
    %v451 = vunpack.c.l.b16 %v380
    %v452 = vunpack.c.l.b16 %v381
    %v453 = vunpack.c.l.b16 %v382
    %v454 = vunpack.c.l.b16 %v383
    %v455 = vunpack.c.l.b16 %v384
    %v456 = vpack.c.b16 %v425, %v424
    %v457 = vpack.c.b16 %v427, %v426
    %v458 = vpack.c.b16 %v429, %v428
    %v459 = vpack.c.b16 %v431, %v430
    %v460 = vpack.c.b16 %v433, %v432
    %v461 = vpack.c.b16 %v435, %v434
    %v462 = vpack.c.b16 %v437, %v436
    %v463 = vpack.c.b16 %v439, %v438
    %v464 = vpack.c.b16 %v441, %v440
    %v465 = vpack.c.b16 %v443, %v442
    %v466 = vpack.c.b16 %v445, %v444
    %v467 = vpack.c.b16 %v447, %v446
    %v468 = vpack.c.b16 %v449, %v448
    %v469 = vpack.c.b16 %v451, %v450
    %v470 = vpack.c.b16 %v453, %v452
    %v471 = vpack.c.b16 %v455, %v454
    %488 = vmatprep.subr.bf16.mxu0 0
    %489 = vmatpush1.bf16.msra.mxu0 %v456
    %490 = vmatprep.subr.bf16.mxu0 0
    %491 = vmatpush1.bf16.msra.mxu0 %v457
    %492 = vmatprep.subr.bf16.mxu0 0
    %493 = vmatpush1.bf16.msra.mxu0 %v458
    %494 = vmatprep.subr.bf16.mxu0 0
    %495 = vmatpush1.bf16.msra.mxu0 %v459
    %496 = vmatprep.subr.bf16.mxu0 0
    %497 = vmatpush1.bf16.msra.mxu0 %v460
    %498 = vmatprep.subr.bf16.mxu0 0
    %499 = vmatpush1.bf16.msra.mxu0 %v461
    %500 = vmatprep.subr.bf16.mxu0 0
    %501 = vmatpush1.bf16.msra.mxu0 %v462
    %502 = vmatprep.subr.bf16.mxu0 0
    %503 = vmatpush1.bf16.msra.mxu0 %v463
    %504 = vmatprep.subr.bf16.mxu0 0
    %505 = vmatpush1.bf16.msra.mxu0 %v464
    %506 = vmatprep.subr.bf16.mxu0 0
    %507 = vmatpush1.bf16.msra.mxu0 %v465
    %508 = vmatprep.subr.bf16.mxu0 0
    %509 = vmatpush1.bf16.msra.mxu0 %v466
    %510 = vmatprep.subr.bf16.mxu0 0
    %511 = vmatpush1.bf16.msra.mxu0 %v467
    %512 = vmatprep.subr.bf16.mxu0 0
    %513 = vmatpush1.bf16.msra.mxu0 %v468
    %514 = vmatprep.subr.bf16.mxu0 0
    %515 = vmatpush1.bf16.msra.mxu0 %v469
    %516 = vmatprep.subr.bf16.mxu0 0
    %517 = vmatpush1.bf16.msra.mxu0 %v470
    %518 = vmatprep.subr.bf16.mxu0 0
    %519 = vmatpush1.bf16.msra.mxu0 %v471
    %520 = vmatprep.mubr.bf16.mxu0 %v352
    %521 = vmatmul.mubr.bf16.gmra.mrb[0].mxu0 %v351
    %v522 = vpop.f32.mrb[0].mxu0
    %v523 = vadd.f32 %v390, %v522
    %v524 = vpop.f32.mrb[0].mxu0
    %v525 = vpop.f32.mrb[0].mxu0
    %v526 = vpop.f32.mrb[0].mxu0
    %527 = vdwg.mxu0
    %v528 = vmax.f32 %v523, 0.0
    %v529 = vld [vmem:[#allocation3] sm:$0x1]
    %v531 = vlaneseq
    %v532 = vshrl.u32 %v531, 7
    %v533 = vsub.s32 0, %v532
    %v534 = vrot.slane %v529, %v533
    %v536 = vmul.f32 %v528, %v534
    %vm537 = vcmask 261120
    %v538 = vsel %vm537, %v536, 0.0
    %539 = vadd.xlane.f32.xlu0 %v538
    %v540 = vpop.xlane.xlu0 %539
    %v541 = vld [vmem:[#allocation2] sm:$0x1]
    %v543 = vlaneseq
    %v544 = vshrl.u32 %v543, 7
    %v545 = vsub.s32 0, %v544
    %v546 = vrot.slane %v541, %v545
    %v548 = vadd.f32 %v540, %v546
    %vm549 = vcmask 7168
    %550 = vst.msk [vmem:[%s10] sm:$0xff] %vm549, %v548
    // Predicated region
    $region46: #{discriminator_forward.1} parent=1 // pred_check
      _
    $region47: #{discriminator_forward.1} parent=1 // pred_check_branch
      %552 = sbr.rel (0) target = $region49
    $region48: #{discriminator_forward.1} parent=1 // pred_region
      _
    $region49: #{discriminator_forward.1} parent=1 // pred_fallthru
      _
    // Predicated region
    $region50: #{discriminator_forward.1} parent=1 // pred_check
      _
    $region51: #{discriminator_forward.1} parent=1 // pred_check_branch
      %554 = sbr.rel (0) target = $region53
    $region52: #{discriminator_forward.1} parent=1 // pred_region
      _
    $region53: #{discriminator_forward.1} parent=1 // pred_fallthru
      _
    %555 = vsyncpa [#allocation4], 1

</llo_original>
